<compile_context>
chip_gen: v7x
topology: tpu7x:2x2x1
jax: 0.10.0
libtpu: 0.0.40
codegen_flags: <defaults>
</compile_context>

<pallas_src>
import functools
import math

import jax
import jax.numpy as jnp
from jax.experimental import pallas as pl
from jax.experimental.pallas import tpu as pltpu

_LANES = 128
_SUBLANES = 8


def _round_up(x, m):
    return ((x + m - 1) // m) * m


def _wsd_kernel(logits_ref, labels_ref, weights_ref, out_ref,
                inter_acc, m1_acc, m2_acc, score_acc, *, inv_num):
    i = pl.program_id(0)               # sample index
    k = pl.program_id(1)               # feature-chunk index (reduction axis)
    ni = pl.num_programs(0)
    nk = pl.num_programs(1)

    # Zero the cross-sample score accumulator at the very first grid step
    # (scratch is uninitialized and persists across grid iterations).
    @pl.when(jnp.logical_and(i == 0, k == 0))
    def _():
        score_acc[...] = jnp.zeros_like(score_acc)

    # Zero the per-sample partial sums at the start of each sample.
    @pl.when(k == 0)
    def _():
        inter_acc[...] = jnp.zeros_like(inter_acc)
        m1_acc[...] = jnp.zeros_like(m1_acc)
        m2_acc[...] = jnp.zeros_like(m2_acc)

    x = logits_ref[0].astype(jnp.float32)      # (blk_rows, 128)
    lab = labels_ref[0].astype(jnp.float32)
    w = weights_ref[0].astype(jnp.float32)

    # sigmoid(x) == 0.5 * (tanh(0.5 * x) + 1): single EUP op + cheap VALU.
    probs = 0.5 * (jnp.tanh(0.5 * x) + 1.0)

    w2 = w * w
    wp = w2 * probs        # reused for both the intersection and m1 sums
    wl = w2 * lab

    blk_rows = x.shape[0]
    g = blk_rows // _SUBLANES

    if g == 1:
        def fold(t):
            return t
    else:
        def fold(t):
            # VALU-only: stack whole (8,128) vregs; no XLU in the hot loop.
            return jnp.sum(t.reshape(g, _SUBLANES, _LANES), axis=0)

    inter_acc[...] += fold(wp * lab)
    m1_acc[...] += fold(wp)
    m2_acc[...] += fold(wl)

    # Finalize this sample: one XLU reduction + scalar math, out of hot loop.
    @pl.when(k == nk - 1)
    def _():
        smooth = 1.0
        inter = jnp.sum(inter_acc[...])
        s1 = jnp.sum(m1_acc[...])
        s2 = jnp.sum(m2_acc[...])
        score = 2.0 * (inter + smooth) / (s1 + s2 + smooth)
        score_acc[...] = score_acc[...] + score

    # Very last grid step: write the scalar loss (output block stays resident
    # across the whole grid and is written back to HBM once).
    @pl.when(jnp.logical_and(i == ni - 1, k == nk - 1))
    def _():
        out_ref[...] = 1.0 - score_acc[...] * inv_num


def weighted_soft_dice_loss(logits, labels, weights, *, block_rows=512):
    """Pallas TPU implementation of WeightedSoftDiceLoss.forward.

    Inputs may be any float dtype (e.g. pass labels/weights as bfloat16 to
    halve their HBM traffic); accumulation is always float32.
    """
    num = logits.shape[0]
    m = math.prod(logits.shape[1:])

    rows = _round_up(-(-m // _LANES), _SUBLANES)
    blk_rows = _round_up(min(block_rows, rows), _SUBLANES)
    rows_p = _round_up(rows, blk_rows)
    m_p = rows_p * _LANES

    def prep(x):
        x = x.reshape(num, m)
        if m_p != m:
            # Zero padding: padded weights are 0, so padded positions
            # contribute nothing to any of the three weighted sums.
            x = jnp.pad(x, ((0, 0), (0, m_p - m)))
        return x.reshape(num, rows_p, _LANES)

    lf, lb, wf = prep(logits), prep(labels), prep(weights)

    kchunks = rows_p // blk_rows
    in_spec = pl.BlockSpec((1, blk_rows, _LANES), lambda i, k: (i, k, 0))

    out = pl.pallas_call(
        functools.partial(_wsd_kernel, inv_num=1.0 / num),
        out_shape=jax.ShapeDtypeStruct((1, 1), jnp.float32),
        grid=(num, kchunks),
        in_specs=[in_spec, in_spec, in_spec],
        out_specs=pl.BlockSpec((1, 1), lambda i, k: (0, 0)),
        scratch_shapes=[
            pltpu.VMEM((_SUBLANES, _LANES), jnp.float32),   # sum w2*p*l
            pltpu.VMEM((_SUBLANES, _LANES), jnp.float32),   # sum w2*p
            pltpu.VMEM((_SUBLANES, _LANES), jnp.float32),   # sum w2*l
            pltpu.VMEM((1, 1), jnp.float32),                # sum of scores
        ],
        compiler_params=pltpu.CompilerParams(
            # Feature axis is a reduction; the single scalar-accumulator
            # output also forces the sample axis to run sequentially.
            # TODO(synk): for v7x megacore, emit per-sample scores and reduce
            # outside the kernel so the sample axis can be "parallel".
            dimension_semantics=("arbitrary", "arbitrary"),
            vmem_limit_bytes=32 * 1024 * 1024,
        ),
    )(lf, lb, wf)
    return out[0, 0]


def _reference(logits, labels, weights):
    # Pure-JAX mirror of the PyTorch module, for correctness checking.
    num = logits.shape[0]
    probs = jax.nn.sigmoid(logits.astype(jnp.float32))
    w = weights.reshape(num, -1).astype(jnp.float32)
    w2 = w * w
    m1 = probs.reshape(num, -1)
    m2 = labels.reshape(num, -1).astype(jnp.float32)
    smooth = 1.0
    score = 2.0 * ((w2 * m1 * m2).sum(1) + smooth) / (
        (w2 * m1).sum(1) + (w2 * m2).sum(1) + smooth
    )
    return 1.0 - score.sum() / num


if __name__ == "__main__":
    key = jax.random.PRNGKey(0)
    k1, k2, k3 = jax.random.split(key, 3)

    N, C, H, W = 2, 4, 16, 16
    logits = jax.random.normal(k1, (N, C, H, W), dtype=jnp.float32)
    labels = jax.random.bernoulli(k2, 0.3, (N, C, H, W)).astype(jnp.float32)
    weights = jax.random.uniform(k3, (N, C, H, W), dtype=jnp.float32,
                                 minval=0.5, maxval=2.0)

    loss = weighted_soft_dice_loss(logits, labels, weights)
    jax.block_until_ready(loss)

    ref = _reference(logits, labels, weights)
    assert jnp.allclose(loss, ref, rtol=1e-5, atol=1e-5), (loss, ref)

    print("KERNEL_OK")
</pallas_src>

<mosaic_0001>
module attributes {stable_mosaic.version = 11 : i64} {
  func.func @_wsd_kernel(%arg0: i32, %arg1: i32, %arg2: memref<1x8x128xf32, #tpu.memory_space<vmem>>, %arg3: memref<1x8x128xf32, #tpu.memory_space<vmem>>, %arg4: memref<1x8x128xf32, #tpu.memory_space<vmem>>, %arg5: memref<1x1xf32, #tpu.memory_space<vmem>>, %arg6: memref<8x128xf32, #tpu.memory_space<vmem>>, %arg7: memref<8x128xf32, #tpu.memory_space<vmem>>, %arg8: memref<8x128xf32, #tpu.memory_space<vmem>>, %arg9: memref<1x1xf32, #tpu.memory_space<vmem>>) attributes {dimension_semantics = [#tpu.dimension_semantics<arbitrary>, #tpu.dimension_semantics<arbitrary>], iteration_bounds = array<i64: 2, 1>, scalar_prefetch = 0 : i64, scratch_operands = 4 : i64, tpu.core_type = #tpu.core_type<tc>, window_params = [{transform_indices = @transform_0, window_bounds = array<i64: 1, 8, 128>}, {transform_indices = @transform_1, window_bounds = array<i64: 1, 8, 128>}, {transform_indices = @transform_2, window_bounds = array<i64: 1, 8, 128>}, {pipeline_mode = #tpu.pipeline_mode<synchronous>, transform_indices = @transform_3, window_bounds = array<i64: 1, 1>}]} {
    %c0_i32 = arith.constant 0 : i32
    %0 = arith.cmpi eq, %arg0, %c0_i32 : i32
    %c0_i32_0 = arith.constant 0 : i32
    %1 = arith.cmpi eq, %arg1, %c0_i32_0 : i32
    %2 = arith.andi %0, %1 : i1
    %3 = arith.extui %2 : i1 to i32
    %c0_i32_1 = arith.constant 0 : i32
    %4 = arith.cmpi ne, %3, %c0_i32_1 : i32
    scf.if %4 {
      %cst_30 = arith.constant 0.000000e+00 : f32
      %42 = vector.broadcast %cst_30 : f32 to vector<1x1xf32>
      %c0_31 = arith.constant 0 : index
      %c0_32 = arith.constant 0 : index
      %43 = vector.load %arg9[%c0_31, %c0_32] : memref<1x1xf32, #tpu.memory_space<vmem>>, vector<1x1xf32>
      tpu.vector_store %arg9[%c0_31, %c0_32], %42 {strides = array<i32>} : memref<1x1xf32, #tpu.memory_space<vmem>>, vector<1x1xf32>,
    } else {
    }
    %c0_i32_2 = arith.constant 0 : i32
    %5 = arith.cmpi eq, %arg1, %c0_i32_2 : i32
    %6 = arith.extui %5 : i1 to i32
    %c0_i32_3 = arith.constant 0 : i32
    %7 = arith.cmpi ne, %6, %c0_i32_3 : i32
    scf.if %7 {
      %cst_30 = arith.constant 0.000000e+00 : f32
      %42 = vector.broadcast %cst_30 : f32 to vector<8x128xf32>
      %c0_31 = arith.constant 0 : index
      %c0_32 = arith.constant 0 : index
      %43 = vector.load %arg6[%c0_31, %c0_32] : memref<8x128xf32, #tpu.memory_space<vmem>>, vector<8x128xf32>
      tpu.vector_store %arg6[%c0_31, %c0_32], %42 {strides = array<i32>} : memref<8x128xf32, #tpu.memory_space<vmem>>, vector<8x128xf32>,
      %cst_33 = arith.constant 0.000000e+00 : f32
      %44 = vector.broadcast %cst_33 : f32 to vector<8x128xf32>
      %c0_34 = arith.constant 0 : index
      %c0_35 = arith.constant 0 : index
      %45 = vector.load %arg7[%c0_34, %c0_35] : memref<8x128xf32, #tpu.memory_space<vmem>>, vector<8x128xf32>
      tpu.vector_store %arg7[%c0_34, %c0_35], %44 {strides = array<i32>} : memref<8x128xf32, #tpu.memory_space<vmem>>, vector<8x128xf32>,
      %cst_36 = arith.constant 0.000000e+00 : f32
      %46 = vector.broadcast %cst_36 : f32 to vector<8x128xf32>
      %c0_37 = arith.constant 0 : index
      %c0_38 = arith.constant 0 : index
      %47 = vector.load %arg8[%c0_37, %c0_38] : memref<8x128xf32, #tpu.memory_space<vmem>>, vector<8x128xf32>
      tpu.vector_store %arg8[%c0_37, %c0_38], %46 {strides = array<i32>} : memref<8x128xf32, #tpu.memory_space<vmem>>, vector<8x128xf32>,
    } else {
    }
    %c0 = arith.constant 0 : index
    %c0_4 = arith.constant 0 : index
    %c0_5 = arith.constant 0 : index
    %8 = vector.load %arg2[%c0, %c0_4, %c0_5] : memref<1x8x128xf32, #tpu.memory_space<vmem>>, vector<1x8x128xf32>
    %9 = vector.shape_cast %8 : vector<1x8x128xf32> to vector<8x128xf32>
    %c0_6 = arith.constant 0 : index
    %c0_7 = arith.constant 0 : index
    %c0_8 = arith.constant 0 : index
    %10 = vector.load %arg3[%c0_6, %c0_7, %c0_8] : memref<1x8x128xf32, #tpu.memory_space<vmem>>, vector<1x8x128xf32>
    %11 = vector.shape_cast %10 : vector<1x8x128xf32> to vector<8x128xf32>
    %c0_9 = arith.constant 0 : index
    %c0_10 = arith.constant 0 : index
    %c0_11 = arith.constant 0 : index
    %12 = vector.load %arg4[%c0_9, %c0_10, %c0_11] : memref<1x8x128xf32, #tpu.memory_space<vmem>>, vector<1x8x128xf32>
    %13 = vector.shape_cast %12 : vector<1x8x128xf32> to vector<8x128xf32>
    %cst = arith.constant 5.000000e-01 : f32
    %14 = vector.broadcast %cst : f32 to vector<8x128xf32>
    %15 = arith.mulf %14, %9 : vector<8x128xf32>
    %16 = math.tanh %15 : vector<8x128xf32>
    %cst_12 = arith.constant 1.000000e+00 : f32
    %17 = vector.broadcast %cst_12 : f32 to vector<8x128xf32>
    %18 = arith.addf %16, %17 : vector<8x128xf32>
    %cst_13 = arith.constant 5.000000e-01 : f32
    %19 = vector.broadcast %cst_13 : f32 to vector<8x128xf32>
    %20 = arith.mulf %19, %18 : vector<8x128xf32>
    %21 = arith.mulf %13, %13 : vector<8x128xf32>
    %22 = arith.mulf %21, %20 : vector<8x128xf32>
    %23 = arith.mulf %21, %11 : vector<8x128xf32>
    %c0_14 = arith.constant 0 : index
    %c0_15 = arith.constant 0 : index
    %24 = vector.load %arg6[%c0_14, %c0_15] : memref<8x128xf32, #tpu.memory_space<vmem>>, vector<8x128xf32>
    %25 = arith.mulf %22, %11 : vector<8x128xf32>
    %26 = arith.addf %24, %25 : vector<8x128xf32>
    %c0_16 = arith.constant 0 : index
    %c0_17 = arith.constant 0 : index
    %27 = vector.load %arg6[%c0_16, %c0_17] : memref<8x128xf32, #tpu.memory_space<vmem>>, vector<8x128xf32>
    tpu.vector_store %arg6[%c0_16, %c0_17], %26 {strides = array<i32>} : memref<8x128xf32, #tpu.memory_space<vmem>>, vector<8x128xf32>,
    %c0_18 = arith.constant 0 : index
    %c0_19 = arith.constant 0 : index
    %28 = vector.load %arg7[%c0_18, %c0_19] : memref<8x128xf32, #tpu.memory_space<vmem>>, vector<8x128xf32>
    %29 = arith.addf %28, %22 : vector<8x128xf32>
    %c0_20 = arith.constant 0 : index
    %c0_21 = arith.constant 0 : index
    %30 = vector.load %arg7[%c0_20, %c0_21] : memref<8x128xf32, #tpu.memory_space<vmem>>, vector<8x128xf32>
    tpu.vector_store %arg7[%c0_20, %c0_21], %29 {strides = array<i32>} : memref<8x128xf32, #tpu.memory_space<vmem>>, vector<8x128xf32>,
    %c0_22 = arith.constant 0 : index
    %c0_23 = arith.constant 0 : index
    %31 = vector.load %arg8[%c0_22, %c0_23] : memref<8x128xf32, #tpu.memory_space<vmem>>, vector<8x128xf32>
    %32 = arith.addf %31, %23 : vector<8x128xf32>
    %c0_24 = arith.constant 0 : index
    %c0_25 = arith.constant 0 : index
    %33 = vector.load %arg8[%c0_24, %c0_25] : memref<8x128xf32, #tpu.memory_space<vmem>>, vector<8x128xf32>
    tpu.vector_store %arg8[%c0_24, %c0_25], %32 {strides = array<i32>} : memref<8x128xf32, #tpu.memory_space<vmem>>, vector<8x128xf32>,
    %c0_i32_26 = arith.constant 0 : i32
    %34 = arith.cmpi eq, %arg1, %c0_i32_26 : i32
    %35 = arith.extui %34 : i1 to i32
    %c0_i32_27 = arith.constant 0 : i32
    %36 = arith.cmpi ne, %35, %c0_i32_27 : i32
    scf.if %36 {
      %c0_30 = arith.constant 0 : index
      %c0_31 = arith.constant 0 : index
      %42 = vector.load %arg6[%c0_30, %c0_31] : memref<8x128xf32, #tpu.memory_space<vmem>>, vector<8x128xf32>
      %43 = vector.shape_cast %42 : vector<8x128xf32> to vector<1x8x128xf32>
      %cst_32 = arith.constant dense<0.000000e+00> : vector<1xf32>
      %44 = vector.multi_reduction <add>, %43, %cst_32 [1, 2] : vector<1x8x128xf32> to vector<1xf32>
      %45 = vector.shape_cast %44 : vector<1xf32> to vector<1x1x1xf32>
      %46 = vector.extract %45[0, 0, 0] : f32 from vector<1x1x1xf32>
      %c0_33 = arith.constant 0 : index
      %c0_34 = arith.constant 0 : index
      %47 = vector.load %arg7[%c0_33, %c0_34] : memref<8x128xf32, #tpu.memory_space<vmem>>, vector<8x128xf32>
      %48 = vector.shape_cast %47 : vector<8x128xf32> to vector<1x8x128xf32>
      %cst_35 = arith.constant dense<0.000000e+00> : vector<1xf32>
      %49 = vector.multi_reduction <add>, %48, %cst_35 [1, 2] : vector<1x8x128xf32> to vector<1xf32>
      %50 = vector.shape_cast %49 : vector<1xf32> to vector<1x1x1xf32>
      %51 = vector.extract %50[0, 0, 0] : f32 from vector<1x1x1xf32>
      %c0_36 = arith.constant 0 : index
      %c0_37 = arith.constant 0 : index
      %52 = vector.load %arg8[%c0_36, %c0_37] : memref<8x128xf32, #tpu.memory_space<vmem>>, vector<8x128xf32>
      %53 = vector.shape_cast %52 : vector<8x128xf32> to vector<1x8x128xf32>
      %cst_38 = arith.constant dense<0.000000e+00> : vector<1xf32>
      %54 = vector.multi_reduction <add>, %53, %cst_38 [1, 2] : vector<1x8x128xf32> to vector<1xf32>
      %55 = vector.shape_cast %54 : vector<1xf32> to vector<1x1x1xf32>
      %56 = vector.extract %55[0, 0, 0] : f32 from vector<1x1x1xf32>
      %cst_39 = arith.constant 1.000000e+00 : f32
      %57 = arith.addf %46, %cst_39 : f32
      %cst_40 = arith.constant 2.000000e+00 : f32
      %58 = arith.mulf %cst_40, %57 : f32
      %59 = arith.addf %51, %56 : f32
      %cst_41 = arith.constant 1.000000e+00 : f32
      %60 = arith.addf %59, %cst_41 : f32
      %61 = arith.divf %58, %60 : f32
      %c0_42 = arith.constant 0 : index
      %c0_43 = arith.constant 0 : index
      %62 = vector.load %arg9[%c0_42, %c0_43] : memref<1x1xf32, #tpu.memory_space<vmem>>, vector<1x1xf32>
      %63 = vector.broadcast %61 : f32 to vector<1x1xf32>
      %64 = arith.addf %62, %63 : vector<1x1xf32>
      %c0_44 = arith.constant 0 : index
      %c0_45 = arith.constant 0 : index
      %65 = vector.load %arg9[%c0_44, %c0_45] : memref<1x1xf32, #tpu.memory_space<vmem>>, vector<1x1xf32>
      tpu.vector_store %arg9[%c0_44, %c0_45], %64 {strides = array<i32>} : memref<1x1xf32, #tpu.memory_space<vmem>>, vector<1x1xf32>,
    } else {
    }
    %c1_i32 = arith.constant 1 : i32
    %37 = arith.cmpi eq, %arg0, %c1_i32 : i32
    %c0_i32_28 = arith.constant 0 : i32
    %38 = arith.cmpi eq, %arg1, %c0_i32_28 : i32
    %39 = arith.andi %37, %38 : i1
    %40 = arith.extui %39 : i1 to i32
    %c0_i32_29 = arith.constant 0 : i32
    %41 = arith.cmpi ne, %40, %c0_i32_29 : i32
    scf.if %41 {
      %c0_30 = arith.constant 0 : index
      %c0_31 = arith.constant 0 : index
      %42 = vector.load %arg9[%c0_30, %c0_31] : memref<1x1xf32, #tpu.memory_space<vmem>>, vector<1x1xf32>
      %cst_32 = arith.constant 5.000000e-01 : f32
      %43 = vector.broadcast %cst_32 : f32 to vector<1x1xf32>
      %44 = arith.mulf %42, %43 : vector<1x1xf32>
      %cst_33 = arith.constant 1.000000e+00 : f32
      %45 = vector.broadcast %cst_33 : f32 to vector<1x1xf32>
      %46 = arith.subf %45, %44 : vector<1x1xf32>
      %c0_34 = arith.constant 0 : index
      %c0_35 = arith.constant 0 : index
      %47 = vector.load %arg5[%c0_34, %c0_35] : memref<1x1xf32, #tpu.memory_space<vmem>>, vector<1x1xf32>
      tpu.vector_store %arg5[%c0_34, %c0_35], %46 {strides = array<i32>} : memref<1x1xf32, #tpu.memory_space<vmem>>, vector<1x1xf32>,
    } else {
    }
    return
  }
  func.func @transform_0(%arg0: i32, %arg1: i32) -> (i32, i32, i32) {
    %c0_i32 = arith.constant 0 : i32
    %c0_i32_0 = arith.constant 0 : i32
    return %arg0, %arg1, %c0_i32 : i32, i32, i32
  }
  func.func @transform_1(%arg0: i32, %arg1: i32) -> (i32, i32, i32) {
    %c0_i32 = arith.constant 0 : i32
    %c0_i32_0 = arith.constant 0 : i32
    return %arg0, %arg1, %c0_i32 : i32, i32, i32
  }
  func.func @transform_2(%arg0: i32, %arg1: i32) -> (i32, i32, i32) {
    %c0_i32 = arith.constant 0 : i32
    %c0_i32_0 = arith.constant 0 : i32
    return %arg0, %arg1, %c0_i32 : i32, i32, i32
  }
  func.func @transform_3(%arg0: i32, %arg1: i32) -> (i32, i32) {
    %c0_i32 = arith.constant 0 : i32
    %c0_i32_0 = arith.constant 0 : i32
    %c0_i32_1 = arith.constant 0 : i32
    return %c0_i32, %c0_i32_0 : i32, i32
  }
}

</mosaic_0001>

<llo_original>
// kernel: tpu_custom_call.1
$region0: #{tpu_custom_call.1}
  #allocation0 [shape = 'u32[]', space=smem, size = 0x4, offset = 0x4, fixed_abs, tag = 'smem constant byte address 0x4 - core index']
  #allocation1 [shape = 'u32[144,128]{1,0:T(1,128)}', space=vmem, size = 0x12000, scoped, tag = 'internal scratch']
  #allocation2 [shape = 'f32[8,128]{1,0:T(8,128)}', space=vmem, size = 0x1000, scoped, tag = 'scratch operand']
  #allocation3 [shape = 'f32[8,128]{1,0:T(8,128)}', space=vmem, size = 0x1000, scoped, tag = 'scratch operand']
  #allocation4 [shape = 'f32[8,128]{1,0:T(8,128)}', space=vmem, size = 0x1000, scoped, tag = 'scratch operand']
  #allocation5 [shape = 'f32[1,1]{1,0:T(1,128)}', space=vmem, size = 0x200, scoped, tag = 'scratch operand']
  %s0 = inlined_call_operand.hbm [shape: f32[2,8,128], index: 0, kind: input, shape index: {}]
  %s1 = inlined_call_operand.hbm [shape: f32[2,8,128], index: 1, kind: input, shape index: {}]
  %s2 = inlined_call_operand.hbm [shape: f32[2,8,128], index: 2, kind: input, shape index: {}]
  %s3 = inlined_call_operand.hbm [shape: f32[1,1], index: 3, kind: output, shape index: {}]
  %s4 = sld [smem:[#allocation0]]
  $region73: #{tpu_custom_call.1} parent=0
    _
  %s6 = ssub.s32 1, %s4
  %s7 = scalar_select 0, %s6, %s4
  $region1: #{tpu_custom_call.1} parent=0
    #allocation6 [shape = 'u8[8192]{0}', space=vmem, size = 0x2000, scoped, tag = 'input window, operand 0']
    #allocation7 [shape = 's32[2]{0}', space=sflag, size = 0x8, scoped, tag = 'scoped memory for tpu_custom_call.1']
    #allocation8 [shape = 's32[2]{0}', space=sflag, size = 0x8, scoped, tag = 'scoped memory for tpu_custom_call.1']
    #allocation9 [shape = 'u8[8192]{0}', space=vmem, size = 0x2000, scoped, tag = 'input window, operand 1']
    #allocation10 [shape = 's32[2]{0}', space=sflag, size = 0x8, scoped, tag = 'scoped memory for tpu_custom_call.1']
    #allocation11 [shape = 'u8[8192]{0}', space=vmem, size = 0x2000, scoped, tag = 'input window, operand 2']
    #allocation12 [shape = 'u8[512]{0}', space=vmem, size = 0x400, scoped, tag = 'output window, operand 0, single buffered']
    %8 = vsyncpa [#allocation7], 0
    %s9 = scalar_lea.sflag [#allocation7], 1
    %10 = vsyncpa %s9, 0
    %11 = vsyncpa [#allocation10], 0
    %s12 = scalar_lea.sflag [#allocation10], 1
    %13 = vsyncpa %s12, 0
    %14 = vsyncpa [#allocation8], 0
    loop: start=0, step=1, limit=4
    $region2: #{tpu_custom_call.1} parent=1 // loop_pre_header
      _
    $region3: #{tpu_custom_call.1} parent=1 // loop_header
      %s16 = sphi 0, %s20
      %p17 = scmp.ge.s32.totalorder %s16, 4
      %s23 = sphi 0, %s35
      %s24 = sphi 0, %s31
      %s25 = sphi 0, %s23
      %s26 = sphi 0, %s24
      %s27 = sphi 0, %s25
      %s28 = sphi 0, %s26
      %s40 = sphi 0, %s42
      %s43 = sphi 0, %s40
      %s44 = sphi 0, %s43
      %s60 = sphi 0, %s44
      %s68 = sphi 0, %s70
      %s71 = sphi 0, %s68
      %s72 = sphi 0, %s71
      %s88 = sphi 0, %s72
      %s96 = sphi 0, %s98
      %s99 = sphi 0, %s96
      %s100 = sphi 0, %s99
      %s116 = sphi 0, %s100
      %s120 = sphi 0, %s120
      %s122 = sphi 0, %s120
      %s123 = sphi 0, %s122
      %s137 = sphi 0, %s123
    $region4: #{tpu_custom_call.1} parent=1 // loop_header_branch
      %19 = sbr.rel (%p17) target = $region8
    $region5: #{tpu_custom_call.1} parent=1 // loop_body
      %s21 = ssub.s32 %s16, 1
      %s22 = ssub.s32 %s16, 2
      %s29 = sadd.s32 1, %s24
      %p30 = scmp.ge.s32.totalorder %s29, 1
      %s31 = scalar_select %p30, 0, %s29
      %s32 = sadd.s32 1, %s23
      %s33 = scalar_select %p30, %s32, %s23
      %p34 = scmp.ge.s32.totalorder %s33, 2
      %s35 = scalar_select %p34, 0, %s33
      %s36 = ssub.s32 %s23, %s35
      %s37 = ssub.s32 %s24, %s31
      %s38 = sor.u32 %s36, %s37
      %p39 = scmp.eq.s32.totalorder %s38, 0
      %s41 = sadd.s32 %s40, 1
      %s42 = scalar_select %p39, %s40, %s41
      %p45 = pneg %p39
      %p46 = scmp.eq.s32.totalorder %s16, 1
      %p47 = por %p45, %p46
      %p48 = scmp.ne.s32.totalorder %s40, %s43
      %p49 = scmp.eq.s32.totalorder %s16, 0
      %p50 = por %p48, %p49
      %p51 = scmp.ne.s32.totalorder %s40, %s43
      %p52 = scmp.eq.s32.totalorder %s21, 1
      %p53 = por %p51, %p52
      %p54 = scmp.ne.s32.totalorder %s43, %s44
      %p55 = scmp.eq.s32.totalorder %s21, 0
      %p56 = por %p54, %p55
      %p57 = scmp.ne.s32.totalorder %s43, %s44
      %p58 = scmp.eq.s32.totalorder %s22, 1
      %p59 = por %p57, %p58
      %p61 = scmp.ne.s32.totalorder %s44, %s60
      %p62 = scmp.eq.s32.totalorder %s22, 0
      %p63 = por %p61, %p62
      %s64 = ssub.s32 %s23, %s35
      %s65 = ssub.s32 %s24, %s31
      %s66 = sor.u32 %s64, %s65
      %p67 = scmp.eq.s32.totalorder %s66, 0
      %s69 = sadd.s32 %s68, 1
      %s70 = scalar_select %p67, %s68, %s69
      %p73 = pneg %p67
      %p74 = scmp.eq.s32.totalorder %s16, 1
      %p75 = por %p73, %p74
      %p76 = scmp.ne.s32.totalorder %s68, %s71
      %p77 = scmp.eq.s32.totalorder %s16, 0
      %p78 = por %p76, %p77
      %p79 = scmp.ne.s32.totalorder %s68, %s71
      %p80 = scmp.eq.s32.totalorder %s21, 1
      %p81 = por %p79, %p80
      %p82 = scmp.ne.s32.totalorder %s71, %s72
      %p83 = scmp.eq.s32.totalorder %s21, 0
      %p84 = por %p82, %p83
      %p85 = scmp.ne.s32.totalorder %s71, %s72
      %p86 = scmp.eq.s32.totalorder %s22, 1
      %p87 = por %p85, %p86
      %p89 = scmp.ne.s32.totalorder %s72, %s88
      %p90 = scmp.eq.s32.totalorder %s22, 0
      %p91 = por %p89, %p90
      %s92 = ssub.s32 %s23, %s35
      %s93 = ssub.s32 %s24, %s31
      %s94 = sor.u32 %s92, %s93
      %p95 = scmp.eq.s32.totalorder %s94, 0
      %s97 = sadd.s32 %s96, 1
      %s98 = scalar_select %p95, %s96, %s97
      %p101 = pneg %p95
      %p102 = scmp.eq.s32.totalorder %s16, 1
      %p103 = por %p101, %p102
      %p104 = scmp.ne.s32.totalorder %s96, %s99
      %p105 = scmp.eq.s32.totalorder %s16, 0
      %p106 = por %p104, %p105
      %p107 = scmp.ne.s32.totalorder %s96, %s99
      %p108 = scmp.eq.s32.totalorder %s21, 1
      %p109 = por %p107, %p108
      %p110 = scmp.ne.s32.totalorder %s99, %s100
      %p111 = scmp.eq.s32.totalorder %s21, 0
      %p112 = por %p110, %p111
      %p113 = scmp.ne.s32.totalorder %s99, %s100
      %p114 = scmp.eq.s32.totalorder %s22, 1
      %p115 = por %p113, %p114
      %p117 = scmp.ne.s32.totalorder %s100, %s116
      %p118 = scmp.eq.s32.totalorder %s22, 0
      %p119 = por %p117, %p118
      %s121 = sadd.s32 %s120, 1
      %p124 = scmp.eq.s32.totalorder %s16, 1
      %p125 = scmp.ne.s32.totalorder %s120, %s122
      %p126 = scmp.eq.s32.totalorder %s16, 0
      %p127 = por %p125, %p126
      %p128 = scmp.ne.s32.totalorder %s120, %s122
      %p129 = scmp.eq.s32.totalorder %s21, 1
      %p130 = por %p128, %p129
      %p131 = scmp.ne.s32.totalorder %s122, %s123
      %p132 = scmp.eq.s32.totalorder %s21, 0
      %p133 = por %p131, %p132
      %p134 = scmp.ne.s32.totalorder %s122, %s123
      %p135 = scmp.eq.s32.totalorder %s22, 1
      %p136 = por %p134, %p135
      %p138 = scmp.ne.s32.totalorder %s123, %s137
      %p139 = scmp.eq.s32.totalorder %s22, 0
      %p140 = por %p138, %p139
      %p141 = scmp.le.s32.totalorder 1, %s16
      %p142 = scmp.lt.s32.totalorder %s16, 3
      %p143 = pnand %p141, %p142
      %p144 = pneg %p143
      // Predicated region
      $region9: #{tpu_custom_call.1} parent=5 // pred_check
        _
      $region10: #{tpu_custom_call.1} parent=5 // pred_check_branch
        %146 = sbr.rel (%p143) target = $region12
      $region11: #{tpu_custom_call.1} parent=5 // pred_region
        %s147 = ssub.s32 %s16, 1
      $region12: #{tpu_custom_call.1} parent=5 // pred_fallthru
        _
      %p148 = scmp.lt.s32.totalorder %s16, 2
      // Predicated region
      $region13: #{tpu_custom_call.1} parent=5 // pred_check
        %p149 = pneg %p148
      $region14: #{tpu_custom_call.1} parent=5 // pred_check_branch
        %151 = sbr.rel (%p149) target = $region16
      $region15: #{tpu_custom_call.1} parent=5 // pred_region
        // Predicated region
        $region17: #{tpu_custom_call.1} parent=15 // pred_check
          %p152 = pneg %p50
        $region18: #{tpu_custom_call.1} parent=15 // pred_check_branch
          %154 = sbr.rel (%p152) target = $region20
        $region19: #{tpu_custom_call.1} parent=15 // pred_region
          %s155 = sand.u32 %s40, 1
          %s156 = scalar_lea.sflag [#allocation7], %s155
          %s157 = sand.u32 %s40, 1
          %s158 = smul.addr %s157, 8
          %s159 = scalar_lea.vmem [#allocation6], %s158
          %s161 = ssub.s32 128, 128
          %162 = vsyncadd %s156, %s161
          %s163 = sadd.s32 %s24, %s23
          %s164 = smul.addr %s163, 128
          %s165 = scalar_lea.hbm %s0, %s164
          %s167 = sshll.u32 %s159, 4
          %s168 = int_to_ptr.vmem [resolvable:$true] %s167
          %170 = dma.hbm_to_vmem [thread:$0]  %s165, 128, %s168, %s156
        $region20: #{tpu_custom_call.1} parent=15 // pred_fallthru
          _
        // Predicated region
        $region21: #{tpu_custom_call.1} parent=15 // pred_check
          %p171 = pneg %p78
        $region22: #{tpu_custom_call.1} parent=15 // pred_check_branch
          %173 = sbr.rel (%p171) target = $region24
        $region23: #{tpu_custom_call.1} parent=15 // pred_region
          %s174 = sand.u32 %s16, 1
          %s175 = scalar_lea.sflag [#allocation10], %s174
          %s176 = sand.u32 %s68, 1
          %s177 = smul.addr %s176, 8
          %s178 = scalar_lea.vmem [#allocation9], %s177
          %s180 = ssub.s32 128, 128
          %181 = vsyncadd %s175, %s180
          %s182 = sadd.s32 %s24, %s23
          %s183 = smul.addr %s182, 128
          %s184 = scalar_lea.hbm %s1, %s183
          %s186 = sshll.u32 %s178, 4
          %s187 = int_to_ptr.vmem [resolvable:$true] %s186
          %189 = dma.hbm_to_vmem [thread:$0]  %s184, 128, %s187, %s175
        $region24: #{tpu_custom_call.1} parent=15 // pred_fallthru
          _
        // Predicated region
        $region25: #{tpu_custom_call.1} parent=15 // pred_check
          %p190 = pneg %p106
        $region26: #{tpu_custom_call.1} parent=15 // pred_check_branch
          %192 = sbr.rel (%p190) target = $region28
        $region27: #{tpu_custom_call.1} parent=15 // pred_region
          %s193 = sand.u32 %s16, 1
          %s194 = scalar_lea.sflag [#allocation10], %s193
          %s195 = sand.u32 %s96, 1
          %s196 = smul.addr %s195, 8
          %s197 = scalar_lea.vmem [#allocation11], %s196
          %s199 = ssub.s32 128, 128
          %200 = vsyncadd %s194, %s199
          %s201 = sadd.s32 %s24, %s23
          %s202 = smul.addr %s201, 128
          %s203 = scalar_lea.hbm %s2, %s202
          %s205 = sshll.u32 %s197, 4
          %s206 = int_to_ptr.vmem [resolvable:$true] %s205
          %208 = dma.hbm_to_vmem [thread:$0]  %s203, 128, %s206, %s194
        $region28: #{tpu_custom_call.1} parent=15 // pred_fallthru
          _
      $region16: #{tpu_custom_call.1} parent=5 // pred_fallthru
        _
      %p209 = scmp.le.s32.totalorder 1, %s16
      %p210 = scmp.lt.s32.totalorder %s16, 3
      %p211 = pnand %p209, %p210
      %p212 = pneg %p211
      // Predicated region
      $region29: #{tpu_custom_call.1} parent=5 // pred_check
        _
      $region30: #{tpu_custom_call.1} parent=5 // pred_check_branch
        %214 = sbr.rel (%p211) target = $region32
      $region31: #{tpu_custom_call.1} parent=5 // pred_region
        %s215 = ssub.s32 %s16, 1
        %s216 = sand.u32 %s43, 1
        %s217 = scalar_lea.sflag [#allocation7], %s216
        %s218 = sand.u32 %s43, 1
        %s219 = smul.addr %s218, 8
        %s220 = scalar_lea.vmem [#allocation6], %s219
        // Predicated region
        $region33: #{tpu_custom_call.1} parent=31 // pred_check
          %p221 = pneg %p56
        $region34: #{tpu_custom_call.1} parent=31 // pred_check_branch
          %223 = sbr.rel (%p221) target = $region36
        $region35: #{tpu_custom_call.1} parent=31 // pred_region
          %224 = dma.done %s217, 128
        $region36: #{tpu_custom_call.1} parent=31 // pred_fallthru
          _
        %s225 = sand.u32 %s21, 1
        %s226 = scalar_lea.sflag [#allocation10], %s225
        %s227 = sand.u32 %s71, 1
        %s228 = smul.addr %s227, 8
        %s229 = scalar_lea.vmem [#allocation9], %s228
        // Predicated region
        $region37: #{tpu_custom_call.1} parent=31 // pred_check
          %p230 = pneg %p84
        $region38: #{tpu_custom_call.1} parent=31 // pred_check_branch
          %232 = sbr.rel (%p230) target = $region40
        $region39: #{tpu_custom_call.1} parent=31 // pred_region
          %233 = dma.done %s226, 128
        $region40: #{tpu_custom_call.1} parent=31 // pred_fallthru
          _
        %s234 = sand.u32 %s21, 1
        %s235 = scalar_lea.sflag [#allocation10], %s234
        %s236 = sand.u32 %s99, 1
        %s237 = smul.addr %s236, 8
        %s238 = scalar_lea.vmem [#allocation11], %s237
        // Predicated region
        $region41: #{tpu_custom_call.1} parent=31 // pred_check
          %p239 = pneg %p112
        $region42: #{tpu_custom_call.1} parent=31 // pred_check_branch
          %241 = sbr.rel (%p239) target = $region44
        $region43: #{tpu_custom_call.1} parent=31 // pred_region
          %242 = dma.done %s235, 128
        $region44: #{tpu_custom_call.1} parent=31 // pred_fallthru
          _
        %s243 = sand.u32 %s43, 1
        %s244 = scalar_lea.sflag [#allocation7], %s243
        %s245 = sand.u32 %s43, 1
        %s246 = smul.addr %s245, 8
        %s247 = scalar_lea.vmem [#allocation6], %s246
        %p248 = pneg %p56
        %p249 = pneg %p53
        %s250 = sand.u32 %s21, 1
        %s251 = scalar_lea.sflag [#allocation10], %s250
        %s252 = sand.u32 %s71, 1
        %s253 = smul.addr %s252, 8
        %s254 = scalar_lea.vmem [#allocation9], %s253
        %p255 = pneg %p84
        %p256 = pneg %p81
        %s257 = sand.u32 %s21, 1
        %s258 = scalar_lea.sflag [#allocation10], %s257
        %s259 = sand.u32 %s99, 1
        %s260 = smul.addr %s259, 8
        %s261 = scalar_lea.vmem [#allocation11], %s260
        %p262 = pneg %p112
        %p263 = pneg %p109
        %p264 = pneg %p133
        %p265 = pneg %p130
        %p266 = scmp.eq.s32.totalorder %s25, 0
        %p267 = scmp.eq.s32.totalorder %s26, 0
        %p268 = pnand %p266, %p267
        %p269 = pneg %p268
        // Predicated region
        $region45: #{tpu_custom_call.1} parent=31 // pred_check
          _
        $region46: #{tpu_custom_call.1} parent=31 // pred_check_branch
          %271 = sbr.rel (%p268) target = $region48
        $region47: #{tpu_custom_call.1} parent=31 // pred_region
          %vm272 = vcmask 0
          %273 = vst.msk [vmem:[#allocation5] sm:$0x1] %vm272, 0.0
        $region48: #{tpu_custom_call.1} parent=31 // pred_fallthru
          _
        // Predicated region
        $region49: #{tpu_custom_call.1} parent=31 // pred_check
          %p274 = pneg %p267
        $region50: #{tpu_custom_call.1} parent=31 // pred_check_branch
          %276 = sbr.rel (%p274) target = $region52
        $region51: #{tpu_custom_call.1} parent=31 // pred_region
          %277 = vst [vmem:[#allocation2] sm:$0xff] 0.0
          %278 = vst [vmem:[#allocation3] sm:$0xff] 0.0
          %279 = vst [vmem:[#allocation4] sm:$0xff] 0.0
        $region52: #{tpu_custom_call.1} parent=31 // pred_fallthru
          _
        %v280 = vld [vmem:[%s220] sm:$0xff]
        %v281 = vld [vmem:[%s229] sm:$0xff]
        %v282 = vld [vmem:[%s238] sm:$0xff]
        %v283 = vmul.f32 %v280, 0.5
        %v284 = vtanh.pop %v283
        %v285 = vadd.f32 %v284, 1.0
        %v286 = vmul.f32 %v285, 0.5
        %v287 = vmul.f32 %v282, %v282
        %v288 = vmul.f32 %v287, %v286
        %v289 = vmul.f32 %v287, %v281
        %v290 = vld [vmem:[#allocation2] sm:$0xff]
        %v291 = vmul.f32 %v288, %v281
        %v292 = vadd.f32 %v290, %v291
        %293 = vst [vmem:[#allocation2] sm:$0xff] %v292
        %v294 = vld [vmem:[#allocation3] sm:$0xff]
        %v295 = vadd.f32 %v294, %v288
        %296 = vst [vmem:[#allocation3] sm:$0xff] %v295
        %v297 = vld [vmem:[#allocation4] sm:$0xff]
        %v298 = vadd.f32 %v297, %v289
        %299 = vst [vmem:[#allocation4] sm:$0xff] %v298
        // Predicated region
        $region53: #{tpu_custom_call.1} parent=31 // pred_check
          %p300 = pneg %p267
        $region54: #{tpu_custom_call.1} parent=31 // pred_check_branch
          %302 = sbr.rel (%p300) target = $region56
        $region55: #{tpu_custom_call.1} parent=31 // pred_region
          %v303 = vld [vmem:[#allocation2] sm:$0xff]
          %304 = vadd.xlane.f32.xlu0 %v303
          %v305 = vpop.xlane.xlu0 %304
          %v306 = vrot.slane %v305, 4
          %v307 = vadd.f32 %v305, %v306
          %v308 = vrot.slane %v307, 2
          %v309 = vadd.f32 %v307, %v308
          %v310 = vrot.slane %v309, 1
          %v311 = vadd.f32 %v309, %v310
          %s312 = vtos %v311
          %v313 = vld [vmem:[#allocation3] sm:$0xff]
          %314 = vadd.xlane.f32.xlu0 %v313
          %v315 = vpop.xlane.xlu0 %314
          %v316 = vrot.slane %v315, 4
          %v317 = vadd.f32 %v315, %v316
          %v318 = vrot.slane %v317, 2
          %v319 = vadd.f32 %v317, %v318
          %v320 = vrot.slane %v319, 1
          %v321 = vadd.f32 %v319, %v320
          %s322 = vtos %v321
          %v323 = vld [vmem:[#allocation4] sm:$0xff]
          %324 = vadd.xlane.f32.xlu0 %v323
          %v325 = vpop.xlane.xlu0 %324
          %v326 = vrot.slane %v325, 4
          %v327 = vadd.f32 %v325, %v326
          %v328 = vrot.slane %v327, 2
          %v329 = vadd.f32 %v327, %v328
          %v330 = vrot.slane %v329, 1
          %v331 = vadd.f32 %v329, %v330
          %s332 = vtos %v331
          %s333 = sadd.f32 %s312, 1.0
          %s334 = smul.f32 %s333, 2.0
          %s335 = sadd.f32 %s322, %s332
          %s336 = sadd.f32 %s335, 1.0
          %v337 = vstv %s336
          %v338 = vrcp.pop %v337
          %s339 = vtos %v338
          %s340 = smul.f32 %s334, %s339
          %v341 = vld [vmem:[#allocation5] sm:$0x1]
          %v342 = vstv %s340
          %v343 = vadd.f32 %v341, %v342
          %vm344 = vcmask 0
          %345 = vst.msk [vmem:[#allocation5] sm:$0x1] %vm344, %v343
        $region56: #{tpu_custom_call.1} parent=31 // pred_fallthru
          _
        %p346 = scmp.eq.s32.totalorder %s25, 1
        %p347 = pnand %p346, %p267
        %p348 = pneg %p347
        // Predicated region
        $region57: #{tpu_custom_call.1} parent=31 // pred_check
          _
        $region58: #{tpu_custom_call.1} parent=31 // pred_check_branch
          %350 = sbr.rel (%p347) target = $region60
        $region59: #{tpu_custom_call.1} parent=31 // pred_region
          %v351 = vld [vmem:[#allocation5] sm:$0x1]
          %v352 = vmul.f32 %v351, 0.5
          %v353 = vsub.f32 1.0, %v352
          %vm354 = vcmask 0
          %355 = vst.msk [vmem:[#allocation12] sm:$0x1] %vm354, %v353
        $region60: #{tpu_custom_call.1} parent=31 // pred_fallthru
          _
        // Predicated region
        $region61: #{tpu_custom_call.1} parent=31 // pred_check
          %p356 = pneg %p130
        $region62: #{tpu_custom_call.1} parent=31 // pred_check_branch
          %358 = sbr.rel (%p356) target = $region64
        $region63: #{tpu_custom_call.1} parent=31 // pred_region
          %s360 = ssub.s32 16, 16
          %361 = vsyncadd [#allocation8], %s360
          %s363 = sshll.u32 [#allocation12], 4
          %s364 = int_to_ptr.vmem [resolvable:$true] %s363
          %366 = dma.vmem_to_hbm [thread:$0]  %s364, 16, %s3, [#allocation8]
        $region64: #{tpu_custom_call.1} parent=31 // pred_fallthru
          _
        // Predicated region
        $region65: #{tpu_custom_call.1} parent=31 // pred_check
          %p367 = pneg %p130
        $region66: #{tpu_custom_call.1} parent=31 // pred_check_branch
          %369 = sbr.rel (%p367) target = $region68
        $region67: #{tpu_custom_call.1} parent=31 // pred_region
          %370 = dma.done [#allocation8], 16
        $region68: #{tpu_custom_call.1} parent=31 // pred_fallthru
          _
      $region32: #{tpu_custom_call.1} parent=5 // pred_fallthru
        _
      %p371 = scmp.le.s32.totalorder 2, %s16
      // Predicated region
      $region69: #{tpu_custom_call.1} parent=5 // pred_check
        %p372 = pneg %p371
      $region70: #{tpu_custom_call.1} parent=5 // pred_check_branch
        %374 = sbr.rel (%p372) target = $region72
      $region71: #{tpu_custom_call.1} parent=5 // pred_region
        %s375 = ssub.s32 %s16, 2
      $region72: #{tpu_custom_call.1} parent=5 // pred_fallthru
        _
    $region6: #{tpu_custom_call.1} parent=1 // loop_footer
      %s20 = sadd.s32 1, %s16
    $region7: #{tpu_custom_call.1} parent=1 // loop_footer_branch
      %15 = sbr.rel target = $region3
    $region8: #{tpu_custom_call.1} parent=1 // loop_exit
      _
    %376 = vsyncpa [#allocation7], 1
    %s377 = scalar_lea.sflag [#allocation7], 1
    %378 = vsyncpa %s377, 1
    %379 = vsyncpa [#allocation10], 1
    %s380 = scalar_lea.sflag [#allocation10], 1
    %381 = vsyncpa %s380, 1
    %382 = vsyncpa [#allocation8], 1
    %s383 = scalar_lea.sflag [#allocation8], 1
    %384 = vsyncpa %s383, 1

</llo_original>
